<compile_context>
chip_gen: v7x
topology: tpu7x:2x2x1
jax: 0.10.0
libtpu: 0.0.40
codegen_flags: <defaults>
</compile_context>

<pallas_src>
import functools

import jax
import jax.numpy as jnp
from jax.experimental import pallas as pl
from jax.experimental.pallas import tpu as pltpu

LANE = 128
SUBLANE = 8


def _round_up(n, m):
    return ((n + m - 1) // m) * m


def _mlp_kernel(xt_ref, w1_ref, b1_ref, w2_ref, b2_ref, w3_ref, b3_ref, o_ref,
                *, output_dim):
    # ---- Layer 1: Linear(input_dim -> hidden) + ReLU, on the VPU ----
    # Transposed layout: h1^T = relu(W1 @ x^T + b1).  input_dim is tiny (2),
    # so accumulate `input_dim` sublane-broadcast FMAs instead of an MXU
    # matmul with K padded 2 -> 128.
    xt = xt_ref[...].astype(jnp.float32)        # (input_dim, TB)
    w1 = w1_ref[...].astype(jnp.float32)        # (Dh, input_dim)
    h = b1_ref[...].astype(jnp.float32)         # (Dh, 1) -> broadcasts to (Dh, TB)
    for f in range(xt_ref.shape[0]):            # static, tiny trip count
        h = h + w1[:, f:f + 1] * xt[f:f + 1, :]
    h1 = jnp.maximum(h, 0.0)                    # (Dh, TB) float32

    # ---- Layer 2: Linear(hidden -> hidden) + ReLU, on the MXU ----
    h2 = jnp.dot(w2_ref[...], h1.astype(w2_ref.dtype),
                 preferred_element_type=jnp.float32)
    h2 = jnp.maximum(h2 + b2_ref[...], 0.0)     # (Dh, TB) float32

    # ---- Layer 3: Linear(hidden -> output), logits ----
    logits = jnp.dot(w3_ref[...], h2.astype(w3_ref.dtype),
                     preferred_element_type=jnp.float32) + b3_ref[...]
    # Lane-dense store; only the first `output_dim` sublanes are real rows.
    o_ref[...] = logits[:output_dim, :]


def prepare_params(params, *, use_bf16=True):
    """Pad / cast weights once (call-invariant); hoisted out of the forward.

    params: PyTorch-orientation weights: w1 (hid,in), b1 (hid,), w2 (hid,hid),
            b2 (hid,), w3 (out,hid), b3 (out,).
    """
    hidden_dim, input_dim = params["w1"].shape
    output_dim = params["w3"].shape[0]
    Dh = _round_up(hidden_dim, LANE)       # 100 -> 128
    Dop = _round_up(output_dim, SUBLANE)   # 3   -> 8
    mm_dtype = jnp.bfloat16 if use_bf16 else jnp.float32

    w1 = jnp.pad(params["w1"].astype(jnp.float32),
                 ((0, Dh - hidden_dim), (0, 0)))                       # (Dh, in)
    b1 = jnp.pad(params["b1"].astype(jnp.float32),
                 (0, Dh - hidden_dim)).reshape(Dh, 1)                  # (Dh, 1)
    w2 = jnp.pad(params["w2"].astype(mm_dtype),
                 ((0, Dh - hidden_dim), (0, Dh - hidden_dim)))         # (Dh, Dh)
    b2 = jnp.pad(params["b2"].astype(jnp.float32),
                 (0, Dh - hidden_dim)).reshape(Dh, 1)                  # (Dh, 1)
    w3 = jnp.pad(params["w3"].astype(mm_dtype),
                 ((0, Dop - output_dim), (0, Dh - hidden_dim)))        # (Dop, Dh)
    b3 = jnp.pad(params["b3"].astype(jnp.float32),
                 (0, Dop - output_dim)).reshape(Dop, 1)                # (Dop, 1)
    return {"w1": w1, "b1": b1, "w2": w2, "b2": b2, "w3": w3, "b3": b3}


@functools.partial(jax.jit, static_argnames=("output_dim", "tile_b"))
def spiralnet_forward(x, prepared, *, output_dim, tile_b=8192):
    """Forward pass of SpiralNet via a single batch-tiled Pallas kernel.

    x: (B, input_dim) float32
    prepared: output of prepare_params()
    returns: (B, output_dim) float32 logits
    """
    B, input_dim = x.shape
    Dh = prepared["w2"].shape[0]
    Dop = prepared["w3"].shape[0]

    # Batch lives in the lane dimension -> tile must be a multiple of 128.
    tb = min(tile_b, _round_up(B, LANE))
    if B >= 2 * LANE:
        # Guarantee >= 2 grid steps so v7x's two TensorCores both get work.
        tb = min(tb, _round_up(pl.cdiv(B, 2), LANE))
    tb = max(LANE, _round_up(tb, LANE))
    grid = (pl.cdiv(B, tb),)          # ragged last block handled by Pallas

    xt = x.astype(jnp.float32).T      # (input_dim, B): lane-dense kernel input

    # Weights/biases: constant index map -> stay resident in VMEM across grid.
    def resident(shape):
        return pl.BlockSpec(shape, lambda i: (0, 0))

    out_t = pl.pallas_call(
        functools.partial(_mlp_kernel, output_dim=output_dim),
        out_shape=jax.ShapeDtypeStruct((output_dim, B), jnp.float32),
        grid_spec=pltpu.PrefetchScalarGridSpec(
            num_scalar_prefetch=0,
            grid=grid,
            in_specs=[
                pl.BlockSpec((input_dim, tb), lambda i: (0, i)),  # x^T (batch-tiled)
                resident((Dh, input_dim)), resident((Dh, 1)),     # w1, b1
                resident((Dh, Dh)), resident((Dh, 1)),            # w2, b2
                resident((Dop, Dh)), resident((Dop, 1)),          # w3, b3
            ],
            out_specs=pl.BlockSpec((output_dim, tb), lambda i: (0, i)),
        ),
        compiler_params=pltpu.CompilerParams(
            dimension_semantics=("parallel",),   # megacore-shard batch on v7x
            vmem_limit_bytes=32 * 1024 * 1024,   # safe on v5e/v6e/v7x; >2x working set
        ),
    )(xt, prepared["w1"], prepared["b1"], prepared["w2"], prepared["b2"],
      prepared["w3"], prepared["b3"])

    return out_t.T                               # (B, output_dim)


def init_params(key, input_dim=2, hidden_dim=100, output_dim=3):
    """Deterministic init mimicking nn.Linear (PyTorch (out, in) orientation)."""
    ks = jax.random.split(key, 6)

    def linear(kw, kb, fan_in, fan_out):
        bound = 1.0 / (fan_in ** 0.5)
        w = jax.random.uniform(kw, (fan_out, fan_in), jnp.float32, -bound, bound)
        b = jax.random.uniform(kb, (fan_out,), jnp.float32, -bound, bound)
        return w, b

    w1, b1 = linear(ks[0], ks[1], input_dim, hidden_dim)
    w2, b2 = linear(ks[2], ks[3], hidden_dim, hidden_dim)
    w3, b3 = linear(ks[4], ks[5], hidden_dim, output_dim)
    return {"w1": w1, "b1": b1, "w2": w2, "b2": b2, "w3": w3, "b3": b3}


def reference_forward(x, p):
    """Pure-JAX f32 reference (matches the PyTorch module's forward)."""
    hp = jax.lax.Precision.HIGHEST
    h1 = jnp.maximum(jnp.dot(x, p["w1"].T, precision=hp) + p["b1"], 0.0)
    h2 = jnp.maximum(jnp.dot(h1, p["w2"].T, precision=hp) + p["b2"], 0.0)
    return jnp.dot(h2, p["w3"].T, precision=hp) + p["b3"]


if __name__ == "__main__":
    key = jax.random.PRNGKey(0)
    kx, kp = jax.random.split(key)

    B, input_dim, hidden_dim, output_dim = 300, 2, 100, 3
    x = jax.random.normal(kx, (B, input_dim), jnp.float32)
    params = init_params(kp, input_dim, hidden_dim, output_dim)

    ref = reference_forward(x, params)

    # Full-f32 matmul path.
    prep_f32 = prepare_params(params, use_bf16=False)
    out_f32 = jax.block_until_ready(
        spiralnet_forward(x, prep_f32, output_dim=output_dim))
    assert out_f32.shape == (B, output_dim), out_f32.shape
    assert jnp.allclose(out_f32, ref, atol=1e-4, rtol=1e-4), \
        float(jnp.max(jnp.abs(out_f32 - ref)))

    # Default fast path: bf16 MXU inputs, f32 accumulation.
    prep_bf16 = prepare_params(params, use_bf16=True)
    out_bf16 = jax.block_until_ready(
        spiralnet_forward(x, prep_bf16, output_dim=output_dim))
    assert out_bf16.shape == (B, output_dim), out_bf16.shape
    assert jnp.allclose(out_bf16, ref, atol=2e-2, rtol=2e-2), \
        float(jnp.max(jnp.abs(out_bf16 - ref)))

    # Small-batch / single-tile ragged case.
    xs = x[:37]
    out_small = jax.block_until_ready(
        spiralnet_forward(xs, prep_bf16, output_dim=output_dim))
    assert out_small.shape == (37, output_dim), out_small.shape
    assert jnp.allclose(out_small, ref[:37], atol=2e-2, rtol=2e-2)

    print("KERNEL_OK")
</pallas_src>

<mosaic_0001>
module attributes {stable_mosaic.version = 11 : i64} {
  func.func @_mlp_kernel(%arg0: i32, %arg1: memref<2x256xf32, #tpu.memory_space<vmem>>, %arg2: memref<128x2xf32, #tpu.memory_space<vmem>>, %arg3: memref<128x1xf32, #tpu.memory_space<vmem>>, %arg4: memref<128x128xf32, #tpu.memory_space<vmem>>, %arg5: memref<128x1xf32, #tpu.memory_space<vmem>>, %arg6: memref<8x128xf32, #tpu.memory_space<vmem>>, %arg7: memref<8x1xf32, #tpu.memory_space<vmem>>, %arg8: memref<3x256xf32, #tpu.memory_space<vmem>>) attributes {dimension_semantics = [#tpu.dimension_semantics<parallel>], iteration_bounds = array<i64: 2>, scalar_prefetch = 0 : i64, scratch_operands = 0 : i64, tpu.core_type = #tpu.core_type<tc>, window_params = [{transform_indices = @transform_0, window_bounds = array<i64: 2, 256>}, {pipeline_mode = #tpu.pipeline_mode<synchronous>, transform_indices = @transform_1, window_bounds = array<i64: 128, 2>}, {pipeline_mode = #tpu.pipeline_mode<synchronous>, transform_indices = @transform_2, window_bounds = array<i64: 128, 1>}, {pipeline_mode = #tpu.pipeline_mode<synchronous>, transform_indices = @transform_3, window_bounds = array<i64: 128, 128>}, {pipeline_mode = #tpu.pipeline_mode<synchronous>, transform_indices = @transform_4, window_bounds = array<i64: 128, 1>}, {pipeline_mode = #tpu.pipeline_mode<synchronous>, transform_indices = @transform_5, window_bounds = array<i64: 8, 128>}, {pipeline_mode = #tpu.pipeline_mode<synchronous>, transform_indices = @transform_6, window_bounds = array<i64: 8, 1>}, {transform_indices = @transform_7, window_bounds = array<i64: 3, 256>}]} {
    %c0 = arith.constant 0 : index
    %c0_0 = arith.constant 0 : index
    %0 = vector.load %arg1[%c0, %c0_0] : memref<2x256xf32, #tpu.memory_space<vmem>>, vector<2x256xf32>
    %c0_1 = arith.constant 0 : index
    %c0_2 = arith.constant 0 : index
    %1 = vector.load %arg2[%c0_1, %c0_2] : memref<128x2xf32, #tpu.memory_space<vmem>>, vector<128x2xf32>
    %c0_3 = arith.constant 0 : index
    %c0_4 = arith.constant 0 : index
    %2 = vector.load %arg3[%c0_3, %c0_4] : memref<128x1xf32, #tpu.memory_space<vmem>>, vector<128x1xf32>
    %3 = vector.extract_strided_slice %1 {offsets = [0, 0], sizes = [128, 1], strides = [1, 1]} : vector<128x2xf32> to vector<128x1xf32>
    %4 = vector.extract_strided_slice %0 {offsets = [0, 0], sizes = [1, 256], strides = [1, 1]} : vector<2x256xf32> to vector<1x256xf32>
    %5 = vector.broadcast %3 : vector<128x1xf32> to vector<128x256xf32>
    %6 = vector.broadcast %4 : vector<1x256xf32> to vector<128x256xf32>
    %7 = arith.mulf %5, %6 : vector<128x256xf32>
    %8 = vector.broadcast %2 : vector<128x1xf32> to vector<128x256xf32>
    %9 = arith.addf %8, %7 : vector<128x256xf32>
    %10 = vector.extract_strided_slice %1 {offsets = [0, 1], sizes = [128, 1], strides = [1, 1]} : vector<128x2xf32> to vector<128x1xf32>
    %11 = vector.extract_strided_slice %0 {offsets = [1, 0], sizes = [1, 256], strides = [1, 1]} : vector<2x256xf32> to vector<1x256xf32>
    %12 = vector.broadcast %10 : vector<128x1xf32> to vector<128x256xf32>
    %13 = vector.broadcast %11 : vector<1x256xf32> to vector<128x256xf32>
    %14 = arith.mulf %12, %13 : vector<128x256xf32>
    %15 = arith.addf %9, %14 : vector<128x256xf32>
    %cst = arith.constant 0.000000e+00 : f32
    %16 = vector.broadcast %cst : f32 to vector<128x256xf32>
    %17 = arith.maximumf %15, %16 : vector<128x256xf32>
    %c0_5 = arith.constant 0 : index
    %c0_6 = arith.constant 0 : index
    %18 = vector.load %arg4[%c0_5, %c0_6] : memref<128x128xf32, #tpu.memory_space<vmem>>, vector<128x128xf32>
    %cst_7 = arith.constant dense<0.000000e+00> : vector<128x256xf32>
    %19 = tpu.matmul %18, %17, %cst_7 {dimension_numbers = #tpu.dot_dimension_numbers<[1], [0], [0], [1], [0, 0, 1, 1], [], []>} : vector<128x128xf32>, vector<128x256xf32>, vector<128x256xf32> -> vector<128x256xf32>
    %c0_8 = arith.constant 0 : index
    %c0_9 = arith.constant 0 : index
    %20 = vector.load %arg5[%c0_8, %c0_9] : memref<128x1xf32, #tpu.memory_space<vmem>>, vector<128x1xf32>
    %21 = vector.broadcast %20 : vector<128x1xf32> to vector<128x256xf32>
    %22 = arith.addf %19, %21 : vector<128x256xf32>
    %cst_10 = arith.constant 0.000000e+00 : f32
    %23 = vector.broadcast %cst_10 : f32 to vector<128x256xf32>
    %24 = arith.maximumf %22, %23 : vector<128x256xf32>
    %c0_11 = arith.constant 0 : index
    %c0_12 = arith.constant 0 : index
    %25 = vector.load %arg6[%c0_11, %c0_12] : memref<8x128xf32, #tpu.memory_space<vmem>>, vector<8x128xf32>
    %cst_13 = arith.constant dense<0.000000e+00> : vector<8x256xf32>
    %26 = tpu.matmul %25, %24, %cst_13 {dimension_numbers = #tpu.dot_dimension_numbers<[1], [0], [0], [1], [0, 0, 1, 1], [], []>} : vector<8x128xf32>, vector<128x256xf32>, vector<8x256xf32> -> vector<8x256xf32>
    %c0_14 = arith.constant 0 : index
    %c0_15 = arith.constant 0 : index
    %27 = vector.load %arg7[%c0_14, %c0_15] : memref<8x1xf32, #tpu.memory_space<vmem>>, vector<8x1xf32>
    %28 = vector.broadcast %27 : vector<8x1xf32> to vector<8x256xf32>
    %29 = arith.addf %26, %28 : vector<8x256xf32>
    %30 = vector.extract_strided_slice %29 {offsets = [0, 0], sizes = [3, 256], strides = [1, 1]} : vector<8x256xf32> to vector<3x256xf32>
    %c0_16 = arith.constant 0 : index
    %c0_17 = arith.constant 0 : index
    %31 = vector.load %arg8[%c0_16, %c0_17] : memref<3x256xf32, #tpu.memory_space<vmem>>, vector<3x256xf32>
    tpu.vector_store %arg8[%c0_16, %c0_17], %30 {strides = array<i32>} : memref<3x256xf32, #tpu.memory_space<vmem>>, vector<3x256xf32>,
    return
  }
  func.func @transform_0(%arg0: i32) -> (i32, i32) {
    %c0_i32 = arith.constant 0 : i32
    %c0_i32_0 = arith.constant 0 : i32
    return %c0_i32, %arg0 : i32, i32
  }
  func.func @transform_1(%arg0: i32) -> (i32, i32) {
    %c0_i32 = arith.constant 0 : i32
    %c0_i32_0 = arith.constant 0 : i32
    %c0_i32_1 = arith.constant 0 : i32
    return %c0_i32, %c0_i32_0 : i32, i32
  }
  func.func @transform_2(%arg0: i32) -> (i32, i32) {
    %c0_i32 = arith.constant 0 : i32
    %c0_i32_0 = arith.constant 0 : i32
    %c0_i32_1 = arith.constant 0 : i32
    return %c0_i32, %c0_i32_0 : i32, i32
  }
  func.func @transform_3(%arg0: i32) -> (i32, i32) {
    %c0_i32 = arith.constant 0 : i32
    %c0_i32_0 = arith.constant 0 : i32
    %c0_i32_1 = arith.constant 0 : i32
    return %c0_i32, %c0_i32_0 : i32, i32
  }
  func.func @transform_4(%arg0: i32) -> (i32, i32) {
    %c0_i32 = arith.constant 0 : i32
    %c0_i32_0 = arith.constant 0 : i32
    %c0_i32_1 = arith.constant 0 : i32
    return %c0_i32, %c0_i32_0 : i32, i32
  }
  func.func @transform_5(%arg0: i32) -> (i32, i32) {
    %c0_i32 = arith.constant 0 : i32
    %c0_i32_0 = arith.constant 0 : i32
    %c0_i32_1 = arith.constant 0 : i32
    return %c0_i32, %c0_i32_0 : i32, i32
  }
  func.func @transform_6(%arg0: i32) -> (i32, i32) {
    %c0_i32 = arith.constant 0 : i32
    %c0_i32_0 = arith.constant 0 : i32
    %c0_i32_1 = arith.constant 0 : i32
    return %c0_i32, %c0_i32_0 : i32, i32
  }
  func.func @transform_7(%arg0: i32) -> (i32, i32) {
    %c0_i32 = arith.constant 0 : i32
    %c0_i32_0 = arith.constant 0 : i32
    return %c0_i32, %arg0 : i32, i32
  }
}

</mosaic_0001>

<llo_original>
// kernel: spiralnet_forward.1
$region0: #{spiralnet_forward.1}
  #allocation0 [shape = 'u32[]', space=smem, size = 0x4, offset = 0x4, fixed_abs, tag = 'smem constant byte address 0x4 - core index']
  #allocation1 [shape = 'u32[144,128]{1,0:T(1,128)}', space=vmem, size = 0x12000, scoped, tag = 'internal scratch']
  %s0 = inlined_call_operand.vmem [shape: f32[2,300], index: 0, kind: input, shape index: {}]
  %s1 = inlined_call_operand.vmem [shape: f32[128,2], index: 1, kind: input, shape index: {}]
  %s2 = inlined_call_operand.vmem [shape: f32[128,1], index: 2, kind: input, shape index: {}]
  %s3 = inlined_call_operand.vmem [shape: f32[128,128], index: 3, kind: input, shape index: {}]
  %s4 = inlined_call_operand.vmem [shape: f32[128,1], index: 4, kind: input, shape index: {}]
  %s5 = inlined_call_operand.vmem [shape: f32[8,128], index: 5, kind: input, shape index: {}]
  %s6 = inlined_call_operand.vmem [shape: f32[8,1], index: 6, kind: input, shape index: {}]
  %s7 = inlined_call_operand.hbm [shape: f32[3,300], index: 7, kind: output, shape index: {}]
  %s8 = sld [smem:[#allocation0]]
  $region61: #{spiralnet_forward.1} parent=0
    _
  %s10 = ssub.s32 1, %s8
  %s11 = scalar_select 0, %s10, %s8
  $region1: #{spiralnet_forward.1} parent=0
    #allocation2 [shape = 'u8[8192]{0}', space=vmem, size = 0x2000, scoped, tag = 'output window, operand 0']
    #allocation3 [shape = 's32[2]{0}', space=sflag, size = 0x8, scoped, tag = 'scoped memory for spiralnet_forward.1']
    %12 = vsyncpa [#allocation3], 0
    %s13 = scalar_lea.sflag [#allocation3], 1
    %14 = vsyncpa %s13, 0
    loop: start=0, step=1, limit=4
    $region2: #{spiralnet_forward.1} parent=1 // loop_pre_header
      _
    $region3: #{spiralnet_forward.1} parent=1 // loop_header
      %s16 = sphi 0, %s20
      %p17 = scmp.ge.s32.totalorder %s16, 4
      %s26 = sphi 0, %s28
      %s29 = sphi 0, %s26
      %s30 = sphi 0, %s29
      %s46 = sphi 0, %s30
      %s50 = sphi 0, %s50
      %s52 = sphi 0, %s50
      %s53 = sphi 0, %s52
      %s67 = sphi 0, %s53
      %s71 = sphi 0, %s71
      %s73 = sphi 0, %s71
      %s74 = sphi 0, %s73
      %s88 = sphi 0, %s74
      %s92 = sphi 0, %s92
      %s94 = sphi 0, %s92
      %s95 = sphi 0, %s94
      %s109 = sphi 0, %s95
      %s113 = sphi 0, %s113
      %s115 = sphi 0, %s113
      %s116 = sphi 0, %s115
      %s130 = sphi 0, %s116
      %s134 = sphi 0, %s134
      %s136 = sphi 0, %s134
      %s137 = sphi 0, %s136
      %s151 = sphi 0, %s137
      %s155 = sphi 0, %s155
      %s157 = sphi 0, %s155
      %s158 = sphi 0, %s157
      %s172 = sphi 0, %s158
      %s178 = sphi 0, %s180
      %s181 = sphi 0, %s178
      %s182 = sphi 0, %s181
      %s198 = sphi 0, %s182
    $region4: #{spiralnet_forward.1} parent=1 // loop_header_branch
      %19 = sbr.rel (%p17) target = $region8
    $region5: #{spiralnet_forward.1} parent=1 // loop_body
      %s21 = ssub.s32 %s16, 1
      %s22 = ssub.s32 %s16, 2
      %s23 = sadd.s32 %s16, 1
      %s24 = ssub.s32 %s16, %s23
      %p25 = scmp.eq.s32.totalorder %s24, 0
      %s27 = sadd.s32 %s26, 1
      %s28 = scalar_select %p25, %s26, %s27
      %p31 = pneg %p25
      %p32 = scmp.eq.s32.totalorder %s16, 1
      %p33 = por %p31, %p32
      %p34 = scmp.ne.s32.totalorder %s26, %s29
      %p35 = scmp.eq.s32.totalorder %s16, 0
      %p36 = por %p34, %p35
      %p37 = scmp.ne.s32.totalorder %s26, %s29
      %p38 = scmp.eq.s32.totalorder %s21, 1
      %p39 = por %p37, %p38
      %p40 = scmp.ne.s32.totalorder %s29, %s30
      %p41 = scmp.eq.s32.totalorder %s21, 0
      %p42 = por %p40, %p41
      %p43 = scmp.ne.s32.totalorder %s29, %s30
      %p44 = scmp.eq.s32.totalorder %s22, 1
      %p45 = por %p43, %p44
      %p47 = scmp.ne.s32.totalorder %s30, %s46
      %p48 = scmp.eq.s32.totalorder %s22, 0
      %p49 = por %p47, %p48
      %s51 = sadd.s32 %s50, 1
      %p54 = scmp.eq.s32.totalorder %s16, 1
      %p55 = scmp.ne.s32.totalorder %s50, %s52
      %p56 = scmp.eq.s32.totalorder %s16, 0
      %p57 = por %p55, %p56
      %p58 = scmp.ne.s32.totalorder %s50, %s52
      %p59 = scmp.eq.s32.totalorder %s21, 1
      %p60 = por %p58, %p59
      %p61 = scmp.ne.s32.totalorder %s52, %s53
      %p62 = scmp.eq.s32.totalorder %s21, 0
      %p63 = por %p61, %p62
      %p64 = scmp.ne.s32.totalorder %s52, %s53
      %p65 = scmp.eq.s32.totalorder %s22, 1
      %p66 = por %p64, %p65
      %p68 = scmp.ne.s32.totalorder %s53, %s67
      %p69 = scmp.eq.s32.totalorder %s22, 0
      %p70 = por %p68, %p69
      %s72 = sadd.s32 %s71, 1
      %p75 = scmp.eq.s32.totalorder %s16, 1
      %p76 = scmp.ne.s32.totalorder %s71, %s73
      %p77 = scmp.eq.s32.totalorder %s16, 0
      %p78 = por %p76, %p77
      %p79 = scmp.ne.s32.totalorder %s71, %s73
      %p80 = scmp.eq.s32.totalorder %s21, 1
      %p81 = por %p79, %p80
      %p82 = scmp.ne.s32.totalorder %s73, %s74
      %p83 = scmp.eq.s32.totalorder %s21, 0
      %p84 = por %p82, %p83
      %p85 = scmp.ne.s32.totalorder %s73, %s74
      %p86 = scmp.eq.s32.totalorder %s22, 1
      %p87 = por %p85, %p86
      %p89 = scmp.ne.s32.totalorder %s74, %s88
      %p90 = scmp.eq.s32.totalorder %s22, 0
      %p91 = por %p89, %p90
      %s93 = sadd.s32 %s92, 1
      %p96 = scmp.eq.s32.totalorder %s16, 1
      %p97 = scmp.ne.s32.totalorder %s92, %s94
      %p98 = scmp.eq.s32.totalorder %s16, 0
      %p99 = por %p97, %p98
      %p100 = scmp.ne.s32.totalorder %s92, %s94
      %p101 = scmp.eq.s32.totalorder %s21, 1
      %p102 = por %p100, %p101
      %p103 = scmp.ne.s32.totalorder %s94, %s95
      %p104 = scmp.eq.s32.totalorder %s21, 0
      %p105 = por %p103, %p104
      %p106 = scmp.ne.s32.totalorder %s94, %s95
      %p107 = scmp.eq.s32.totalorder %s22, 1
      %p108 = por %p106, %p107
      %p110 = scmp.ne.s32.totalorder %s95, %s109
      %p111 = scmp.eq.s32.totalorder %s22, 0
      %p112 = por %p110, %p111
      %s114 = sadd.s32 %s113, 1
      %p117 = scmp.eq.s32.totalorder %s16, 1
      %p118 = scmp.ne.s32.totalorder %s113, %s115
      %p119 = scmp.eq.s32.totalorder %s16, 0
      %p120 = por %p118, %p119
      %p121 = scmp.ne.s32.totalorder %s113, %s115
      %p122 = scmp.eq.s32.totalorder %s21, 1
      %p123 = por %p121, %p122
      %p124 = scmp.ne.s32.totalorder %s115, %s116
      %p125 = scmp.eq.s32.totalorder %s21, 0
      %p126 = por %p124, %p125
      %p127 = scmp.ne.s32.totalorder %s115, %s116
      %p128 = scmp.eq.s32.totalorder %s22, 1
      %p129 = por %p127, %p128
      %p131 = scmp.ne.s32.totalorder %s116, %s130
      %p132 = scmp.eq.s32.totalorder %s22, 0
      %p133 = por %p131, %p132
      %s135 = sadd.s32 %s134, 1
      %p138 = scmp.eq.s32.totalorder %s16, 1
      %p139 = scmp.ne.s32.totalorder %s134, %s136
      %p140 = scmp.eq.s32.totalorder %s16, 0
      %p141 = por %p139, %p140
      %p142 = scmp.ne.s32.totalorder %s134, %s136
      %p143 = scmp.eq.s32.totalorder %s21, 1
      %p144 = por %p142, %p143
      %p145 = scmp.ne.s32.totalorder %s136, %s137
      %p146 = scmp.eq.s32.totalorder %s21, 0
      %p147 = por %p145, %p146
      %p148 = scmp.ne.s32.totalorder %s136, %s137
      %p149 = scmp.eq.s32.totalorder %s22, 1
      %p150 = por %p148, %p149
      %p152 = scmp.ne.s32.totalorder %s137, %s151
      %p153 = scmp.eq.s32.totalorder %s22, 0
      %p154 = por %p152, %p153
      %s156 = sadd.s32 %s155, 1
      %p159 = scmp.eq.s32.totalorder %s16, 1
      %p160 = scmp.ne.s32.totalorder %s155, %s157
      %p161 = scmp.eq.s32.totalorder %s16, 0
      %p162 = por %p160, %p161
      %p163 = scmp.ne.s32.totalorder %s155, %s157
      %p164 = scmp.eq.s32.totalorder %s21, 1
      %p165 = por %p163, %p164
      %p166 = scmp.ne.s32.totalorder %s157, %s158
      %p167 = scmp.eq.s32.totalorder %s21, 0
      %p168 = por %p166, %p167
      %p169 = scmp.ne.s32.totalorder %s157, %s158
      %p170 = scmp.eq.s32.totalorder %s22, 1
      %p171 = por %p169, %p170
      %p173 = scmp.ne.s32.totalorder %s158, %s172
      %p174 = scmp.eq.s32.totalorder %s22, 0
      %p175 = por %p173, %p174
      %s176 = ssub.s32 %s16, %s23
      %p177 = scmp.eq.s32.totalorder %s176, 0
      %s179 = sadd.s32 %s178, 1
      %s180 = scalar_select %p177, %s178, %s179
      %p183 = pneg %p177
      %p184 = scmp.eq.s32.totalorder %s16, 1
      %p185 = por %p183, %p184
      %p186 = scmp.ne.s32.totalorder %s178, %s181
      %p187 = scmp.eq.s32.totalorder %s16, 0
      %p188 = por %p186, %p187
      %p189 = scmp.ne.s32.totalorder %s178, %s181
      %p190 = scmp.eq.s32.totalorder %s21, 1
      %p191 = por %p189, %p190
      %p192 = scmp.ne.s32.totalorder %s181, %s182
      %p193 = scmp.eq.s32.totalorder %s21, 0
      %p194 = por %p192, %p193
      %p195 = scmp.ne.s32.totalorder %s181, %s182
      %p196 = scmp.eq.s32.totalorder %s22, 1
      %p197 = por %p195, %p196
      %p199 = scmp.ne.s32.totalorder %s182, %s198
      %p200 = scmp.eq.s32.totalorder %s22, 0
      %p201 = por %p199, %p200
      %p202 = scmp.le.s32.totalorder 1, %s16
      %p203 = scmp.lt.s32.totalorder %s16, 3
      %p204 = pnand %p202, %p203
      %p205 = pneg %p204
      // Predicated region
      $region9: #{spiralnet_forward.1} parent=5 // pred_check
        _
      $region10: #{spiralnet_forward.1} parent=5 // pred_check_branch
        %207 = sbr.rel (%p204) target = $region12
      $region11: #{spiralnet_forward.1} parent=5 // pred_region
        %s208 = ssub.s32 %s16, 1
        // Predicated region
        $region13: #{spiralnet_forward.1} parent=11 // pred_check
          %p209 = pneg %p63
        $region14: #{spiralnet_forward.1} parent=11 // pred_check_branch
          %211 = sbr.rel (%p209) target = $region16
        $region15: #{spiralnet_forward.1} parent=11 // pred_region
          _
        $region16: #{spiralnet_forward.1} parent=11 // pred_fallthru
          _
        // Predicated region
        $region17: #{spiralnet_forward.1} parent=11 // pred_check
          %p212 = pneg %p84
        $region18: #{spiralnet_forward.1} parent=11 // pred_check_branch
          %214 = sbr.rel (%p212) target = $region20
        $region19: #{spiralnet_forward.1} parent=11 // pred_region
          _
        $region20: #{spiralnet_forward.1} parent=11 // pred_fallthru
          _
        // Predicated region
        $region21: #{spiralnet_forward.1} parent=11 // pred_check
          %p215 = pneg %p105
        $region22: #{spiralnet_forward.1} parent=11 // pred_check_branch
          %217 = sbr.rel (%p215) target = $region24
        $region23: #{spiralnet_forward.1} parent=11 // pred_region
          _
        $region24: #{spiralnet_forward.1} parent=11 // pred_fallthru
          _
        // Predicated region
        $region25: #{spiralnet_forward.1} parent=11 // pred_check
          %p218 = pneg %p126
        $region26: #{spiralnet_forward.1} parent=11 // pred_check_branch
          %220 = sbr.rel (%p218) target = $region28
        $region27: #{spiralnet_forward.1} parent=11 // pred_region
          _
        $region28: #{spiralnet_forward.1} parent=11 // pred_fallthru
          _
        // Predicated region
        $region29: #{spiralnet_forward.1} parent=11 // pred_check
          %p221 = pneg %p147
        $region30: #{spiralnet_forward.1} parent=11 // pred_check_branch
          %223 = sbr.rel (%p221) target = $region32
        $region31: #{spiralnet_forward.1} parent=11 // pred_region
          _
        $region32: #{spiralnet_forward.1} parent=11 // pred_fallthru
          _
        // Predicated region
        $region33: #{spiralnet_forward.1} parent=11 // pred_check
          %p224 = pneg %p168
        $region34: #{spiralnet_forward.1} parent=11 // pred_check_branch
          %226 = sbr.rel (%p224) target = $region36
        $region35: #{spiralnet_forward.1} parent=11 // pred_region
          _
        $region36: #{spiralnet_forward.1} parent=11 // pred_fallthru
          _
      $region12: #{spiralnet_forward.1} parent=5 // pred_fallthru
        _
      %p227 = scmp.lt.s32.totalorder %s16, 2
      // Predicated region
      $region37: #{spiralnet_forward.1} parent=5 // pred_check
        %p228 = pneg %p227
      $region38: #{spiralnet_forward.1} parent=5 // pred_check_branch
        %230 = sbr.rel (%p228) target = $region40
      $region39: #{spiralnet_forward.1} parent=5 // pred_region
        // Predicated region
        $region41: #{spiralnet_forward.1} parent=39 // pred_check
          %p231 = pneg %p36
        $region42: #{spiralnet_forward.1} parent=39 // pred_check_branch
          %233 = sbr.rel (%p231) target = $region44
        $region43: #{spiralnet_forward.1} parent=39 // pred_region
          %s234 = smul.u32 2, %s16
          %s235 = ssub.s32 3, %s234
          %p236 = scmp.lt.s32.totalorder %s235, 2
          %s237 = scalar_select %p236, %s235, 2
          %s238 = smul.u32 32, %s237
          %p239 = scmp.lt.s32.totalorder %s234, 2
          %s240 = scalar_select %p239, %s234, 2
          %s241 = smul.addr %s240, 2
          %s242 = scalar_lea.vmem %s0, %s241
          %s243 = smul.u32 2, %s16
          %s244 = ssub.s32 3, %s243
          %p245 = scmp.lt.s32.totalorder %s244, 2
          %s246 = scalar_select %p245, %s244, 2
          %s247 = smul.u32 32, %s246
        $region44: #{spiralnet_forward.1} parent=39 // pred_fallthru
          _
      $region40: #{spiralnet_forward.1} parent=5 // pred_fallthru
        _
      %p248 = scmp.le.s32.totalorder 1, %s16
      %p249 = scmp.lt.s32.totalorder %s16, 3
      %p250 = pnand %p248, %p249
      %p251 = pneg %p250
      // Predicated region
      $region45: #{spiralnet_forward.1} parent=5 // pred_check
        _
      $region46: #{spiralnet_forward.1} parent=5 // pred_check_branch
        %253 = sbr.rel (%p250) target = $region48
      $region47: #{spiralnet_forward.1} parent=5 // pred_region
        %s254 = ssub.s32 %s16, 1
        %s255 = smul.u32 2, %s21
        %s256 = ssub.s32 3, %s255
        %p257 = scmp.lt.s32.totalorder %s256, 2
        %s258 = scalar_select %p257, %s256, 2
        %s259 = smul.u32 32, %s258
        %p260 = scmp.lt.s32.totalorder %s255, 2
        %s261 = scalar_select %p260, %s255, 2
        %s262 = smul.addr %s261, 2
        %s263 = scalar_lea.vmem %s0, %s262
        %p264 = pneg %p42
        %p265 = pneg %p39
        %p266 = pneg %p63
        %p267 = pneg %p60
        %p268 = pneg %p84
        %p269 = pneg %p81
        %p270 = pneg %p105
        %p271 = pneg %p102
        %p272 = pneg %p126
        %p273 = pneg %p123
        %p274 = pneg %p147
        %p275 = pneg %p144
        %p276 = pneg %p168
        %p277 = pneg %p165
        %p278 = pneg %p194
        %p279 = pneg %p191
        %s280 = sand.u32 %s181, 1
        %s281 = scalar_lea.sflag [#allocation3], %s280
        %s282 = sand.u32 %s181, 1
        %s283 = smul.addr %s282, 8
        %s284 = scalar_lea.vmem [#allocation2], %s283
        %s285 = smul.u32 2, %s21
        %s286 = ssub.s32 3, %s285
        %p287 = scmp.lt.s32.totalorder %s286, 2
        %s288 = scalar_select %p287, %s286, 2
        %s289 = smul.u32 32, %s288
        %p290 = scmp.lt.s32.totalorder %s285, 2
        %s291 = scalar_select %p290, %s285, 2
        %s292 = smul.addr %s291, 2
        %s293 = scalar_lea.vmem %s0, %s292
        %s294 = smul.u32 2, %s21
        %s295 = ssub.s32 3, %s294
        %p296 = scmp.lt.s32.totalorder %s295, 2
        %s297 = scalar_select %p296, %s295, 2
        %s298 = smul.u32 32, %s297
        %s299 = smul.u32 2, %s21
        %s300 = ssub.s32 3, %s299
        %p301 = scmp.lt.s32.totalorder %s300, 2
        %s302 = scalar_select %p301, %s300, 2
        %s303 = smul.u32 64, %s302
        %v304 = vld [vmem:[%s293] sm:$0xf]
        %v305 = vld [vmem:[%s1] sm:$0xff]
        %v306 = vld [vmem:[%s1 + $0x8] sm:$0xff]
        %v307 = vld [vmem:[%s1 + $0x10] sm:$0xff]
        %v308 = vld [vmem:[%s1 + $0x18] sm:$0xff]
        %v309 = vld [vmem:[%s1 + $0x20] sm:$0xff]
        %v310 = vld [vmem:[%s1 + $0x28] sm:$0xff]
        %v311 = vld [vmem:[%s1 + $0x30] sm:$0xff]
        %v312 = vld [vmem:[%s1 + $0x38] sm:$0xff]
        %v313 = vld [vmem:[%s1 + $0x40] sm:$0xff]
        %v314 = vld [vmem:[%s1 + $0x48] sm:$0xff]
        %v315 = vld [vmem:[%s1 + $0x50] sm:$0xff]
        %v316 = vld [vmem:[%s1 + $0x58] sm:$0xff]
        %v317 = vld [vmem:[%s1 + $0x60] sm:$0xff]
        %v318 = vld [vmem:[%s1 + $0x68] sm:$0xff]
        %v319 = vld [vmem:[%s1 + $0x70] sm:$0xff]
        %v320 = vld [vmem:[%s1 + $0x78] sm:$0xff]
        %v321 = vld [vmem:[%s2] sm:$0xff]
        %v322 = vld [vmem:[%s2 + $0x8] sm:$0xff]
        %v323 = vld [vmem:[%s2 + $0x10] sm:$0xff]
        %v324 = vld [vmem:[%s2 + $0x18] sm:$0xff]
        %v325 = vld [vmem:[%s2 + $0x20] sm:$0xff]
        %v326 = vld [vmem:[%s2 + $0x28] sm:$0xff]
        %v327 = vld [vmem:[%s2 + $0x30] sm:$0xff]
        %v328 = vld [vmem:[%s2 + $0x38] sm:$0xff]
        %v329 = vld [vmem:[%s2 + $0x40] sm:$0xff]
        %v330 = vld [vmem:[%s2 + $0x48] sm:$0xff]
        %v331 = vld [vmem:[%s2 + $0x50] sm:$0xff]
        %v332 = vld [vmem:[%s2 + $0x58] sm:$0xff]
        %v333 = vld [vmem:[%s2 + $0x60] sm:$0xff]
        %v334 = vld [vmem:[%s2 + $0x68] sm:$0xff]
        %v335 = vld [vmem:[%s2 + $0x70] sm:$0xff]
        %v336 = vld [vmem:[%s2 + $0x78] sm:$0xff]
        %338 = vset.pattern.permute.xlu0 0
        %339 = vperm.xlu0 %338, %v305
        %v340 = vpop.permute.xlu0 %339
        %343 = vset.pattern.permute.xlu0 0
        %344 = vperm.xlu0 %343, %v306
        %v345 = vpop.permute.xlu0 %344
        %348 = vset.pattern.permute.xlu0 0
        %349 = vperm.xlu0 %348, %v307
        %v350 = vpop.permute.xlu0 %349
        %353 = vset.pattern.permute.xlu0 0
        %354 = vperm.xlu0 %353, %v308
        %v355 = vpop.permute.xlu0 %354
        %358 = vset.pattern.permute.xlu0 0
        %359 = vperm.xlu0 %358, %v309
        %v360 = vpop.permute.xlu0 %359
        %363 = vset.pattern.permute.xlu0 0
        %364 = vperm.xlu0 %363, %v310
        %v365 = vpop.permute.xlu0 %364
        %368 = vset.pattern.permute.xlu0 0
        %369 = vperm.xlu0 %368, %v311
        %v370 = vpop.permute.xlu0 %369
        %373 = vset.pattern.permute.xlu0 0
        %374 = vperm.xlu0 %373, %v312
        %v375 = vpop.permute.xlu0 %374
        %378 = vset.pattern.permute.xlu0 0
        %379 = vperm.xlu0 %378, %v313
        %v380 = vpop.permute.xlu0 %379
        %383 = vset.pattern.permute.xlu0 0
        %384 = vperm.xlu0 %383, %v314
        %v385 = vpop.permute.xlu0 %384
        %388 = vset.pattern.permute.xlu0 0
        %389 = vperm.xlu0 %388, %v315
        %v390 = vpop.permute.xlu0 %389
        %393 = vset.pattern.permute.xlu0 0
        %394 = vperm.xlu0 %393, %v316
        %v395 = vpop.permute.xlu0 %394
        %398 = vset.pattern.permute.xlu0 0
        %399 = vperm.xlu0 %398, %v317
        %v400 = vpop.permute.xlu0 %399
        %403 = vset.pattern.permute.xlu0 0
        %404 = vperm.xlu0 %403, %v318
        %v405 = vpop.permute.xlu0 %404
        %408 = vset.pattern.permute.xlu0 0
        %409 = vperm.xlu0 %408, %v319
        %v410 = vpop.permute.xlu0 %409
        %413 = vset.pattern.permute.xlu0 0
        %414 = vperm.xlu0 %413, %v320
        %v415 = vpop.permute.xlu0 %414
        %v418 = vlaneseq
        %v419 = vshrl.u32 %v418, 7
        %v420 = vsub.s32 0, %v419
        %v421 = vrot.slane %v304, %v420
        %v422 = vlaneseq
        %v423 = vshrl.u32 %v422, 7
        %v424 = vsub.s32 2, %v423
        %v425 = vrot.slane %v304, %v424
        %v428 = vlaneseq
        %v429 = vshrl.u32 %v428, 7
        %v430 = vsub.s32 0, %v429
        %v431 = vrot.slane %v421, %v430
        %v432 = vlaneseq
        %v433 = vshrl.u32 %v432, 7
        %v434 = vsub.s32 0, %v433
        %v435 = vrot.slane %v425, %v434
        %v436 = vmul.f32 %v340, %v431
        %v437 = vmul.f32 %v340, %v435
        %v438 = vmul.f32 %v345, %v431
        %v439 = vmul.f32 %v345, %v435
        %v440 = vmul.f32 %v350, %v431
        %v441 = vmul.f32 %v350, %v435
        %v442 = vmul.f32 %v355, %v431
        %v443 = vmul.f32 %v355, %v435
        %v444 = vmul.f32 %v360, %v431
        %v445 = vmul.f32 %v360, %v435
        %v446 = vmul.f32 %v365, %v431
        %v447 = vmul.f32 %v365, %v435
        %v448 = vmul.f32 %v370, %v431
        %v449 = vmul.f32 %v370, %v435
        %v450 = vmul.f32 %v375, %v431
        %v451 = vmul.f32 %v375, %v435
        %v452 = vmul.f32 %v380, %v431
        %v453 = vmul.f32 %v380, %v435
        %v454 = vmul.f32 %v385, %v431
        %v455 = vmul.f32 %v385, %v435
        %v456 = vmul.f32 %v390, %v431
        %v457 = vmul.f32 %v390, %v435
        %v458 = vmul.f32 %v395, %v431
        %v459 = vmul.f32 %v395, %v435
        %v460 = vmul.f32 %v400, %v431
        %v461 = vmul.f32 %v400, %v435
        %v462 = vmul.f32 %v405, %v431
        %v463 = vmul.f32 %v405, %v435
        %v464 = vmul.f32 %v410, %v431
        %v465 = vmul.f32 %v410, %v435
        %v466 = vmul.f32 %v415, %v431
        %v467 = vmul.f32 %v415, %v435
        %469 = vset.pattern.permute.xlu0 0
        %470 = vperm.xlu0 %469, %v321
        %v471 = vpop.permute.xlu0 %470
        %474 = vset.pattern.permute.xlu0 0
        %475 = vperm.xlu0 %474, %v322
        %v476 = vpop.permute.xlu0 %475
        %479 = vset.pattern.permute.xlu0 0
        %480 = vperm.xlu0 %479, %v323
        %v481 = vpop.permute.xlu0 %480
        %484 = vset.pattern.permute.xlu0 0
        %485 = vperm.xlu0 %484, %v324
        %v486 = vpop.permute.xlu0 %485
        %489 = vset.pattern.permute.xlu0 0
        %490 = vperm.xlu0 %489, %v325
        %v491 = vpop.permute.xlu0 %490
        %494 = vset.pattern.permute.xlu0 0
        %495 = vperm.xlu0 %494, %v326
        %v496 = vpop.permute.xlu0 %495
        %499 = vset.pattern.permute.xlu0 0
        %500 = vperm.xlu0 %499, %v327
        %v501 = vpop.permute.xlu0 %500
        %504 = vset.pattern.permute.xlu0 0
        %505 = vperm.xlu0 %504, %v328
        %v506 = vpop.permute.xlu0 %505
        %509 = vset.pattern.permute.xlu0 0
        %510 = vperm.xlu0 %509, %v329
        %v511 = vpop.permute.xlu0 %510
        %514 = vset.pattern.permute.xlu0 0
        %515 = vperm.xlu0 %514, %v330
        %v516 = vpop.permute.xlu0 %515
        %519 = vset.pattern.permute.xlu0 0
        %520 = vperm.xlu0 %519, %v331
        %v521 = vpop.permute.xlu0 %520
        %524 = vset.pattern.permute.xlu0 0
        %525 = vperm.xlu0 %524, %v332
        %v526 = vpop.permute.xlu0 %525
        %529 = vset.pattern.permute.xlu0 0
        %530 = vperm.xlu0 %529, %v333
        %v531 = vpop.permute.xlu0 %530
        %534 = vset.pattern.permute.xlu0 0
        %535 = vperm.xlu0 %534, %v334
        %v536 = vpop.permute.xlu0 %535
        %539 = vset.pattern.permute.xlu0 0
        %540 = vperm.xlu0 %539, %v335
        %v541 = vpop.permute.xlu0 %540
        %544 = vset.pattern.permute.xlu0 0
        %545 = vperm.xlu0 %544, %v336
        %v546 = vpop.permute.xlu0 %545
        %v548 = vadd.f32 %v471, %v436
        %v549 = vadd.f32 %v471, %v437
        %v550 = vadd.f32 %v476, %v438
        %v551 = vadd.f32 %v476, %v439
        %v552 = vadd.f32 %v481, %v440
        %v553 = vadd.f32 %v481, %v441
        %v554 = vadd.f32 %v486, %v442
        %v555 = vadd.f32 %v486, %v443
        %v556 = vadd.f32 %v491, %v444
        %v557 = vadd.f32 %v491, %v445
        %v558 = vadd.f32 %v496, %v446
        %v559 = vadd.f32 %v496, %v447
        %v560 = vadd.f32 %v501, %v448
        %v561 = vadd.f32 %v501, %v449
        %v562 = vadd.f32 %v506, %v450
        %v563 = vadd.f32 %v506, %v451
        %v564 = vadd.f32 %v511, %v452
        %v565 = vadd.f32 %v511, %v453
        %v566 = vadd.f32 %v516, %v454
        %v567 = vadd.f32 %v516, %v455
        %v568 = vadd.f32 %v521, %v456
        %v569 = vadd.f32 %v521, %v457
        %v570 = vadd.f32 %v526, %v458
        %v571 = vadd.f32 %v526, %v459
        %v572 = vadd.f32 %v531, %v460
        %v573 = vadd.f32 %v531, %v461
        %v574 = vadd.f32 %v536, %v462
        %v575 = vadd.f32 %v536, %v463
        %v576 = vadd.f32 %v541, %v464
        %v577 = vadd.f32 %v541, %v465
        %v578 = vadd.f32 %v546, %v466
        %v579 = vadd.f32 %v546, %v467
        %580 = vset.pattern.permute.xlu0 1
        %581 = vperm.xlu0 %580, %v305
        %v582 = vpop.permute.xlu0 %581
        %584 = vset.pattern.permute.xlu0 1
        %585 = vperm.xlu0 %584, %v306
        %v586 = vpop.permute.xlu0 %585
        %588 = vset.pattern.permute.xlu0 1
        %589 = vperm.xlu0 %588, %v307
        %v590 = vpop.permute.xlu0 %589
        %592 = vset.pattern.permute.xlu0 1
        %593 = vperm.xlu0 %592, %v308
        %v594 = vpop.permute.xlu0 %593
        %596 = vset.pattern.permute.xlu0 1
        %597 = vperm.xlu0 %596, %v309
        %v598 = vpop.permute.xlu0 %597
        %600 = vset.pattern.permute.xlu0 1
        %601 = vperm.xlu0 %600, %v310
        %v602 = vpop.permute.xlu0 %601
        %604 = vset.pattern.permute.xlu0 1
        %605 = vperm.xlu0 %604, %v311
        %v606 = vpop.permute.xlu0 %605
        %608 = vset.pattern.permute.xlu0 1
        %609 = vperm.xlu0 %608, %v312
        %v610 = vpop.permute.xlu0 %609
        %612 = vset.pattern.permute.xlu0 1
        %613 = vperm.xlu0 %612, %v313
        %v614 = vpop.permute.xlu0 %613
        %616 = vset.pattern.permute.xlu0 1
        %617 = vperm.xlu0 %616, %v314
        %v618 = vpop.permute.xlu0 %617
        %620 = vset.pattern.permute.xlu0 1
        %621 = vperm.xlu0 %620, %v315
        %v622 = vpop.permute.xlu0 %621
        %624 = vset.pattern.permute.xlu0 1
        %625 = vperm.xlu0 %624, %v316
        %v626 = vpop.permute.xlu0 %625
        %628 = vset.pattern.permute.xlu0 1
        %629 = vperm.xlu0 %628, %v317
        %v630 = vpop.permute.xlu0 %629
        %632 = vset.pattern.permute.xlu0 1
        %633 = vperm.xlu0 %632, %v318
        %v634 = vpop.permute.xlu0 %633
        %636 = vset.pattern.permute.xlu0 1
        %637 = vperm.xlu0 %636, %v319
        %v638 = vpop.permute.xlu0 %637
        %640 = vset.pattern.permute.xlu0 1
        %641 = vperm.xlu0 %640, %v320
        %v642 = vpop.permute.xlu0 %641
        %v644 = vlaneseq
        %v645 = vshrl.u32 %v644, 7
        %v646 = vsub.s32 1, %v645
        %v647 = vrot.slane %v304, %v646
        %v648 = vlaneseq
        %v649 = vshrl.u32 %v648, 7
        %v650 = vsub.s32 3, %v649
        %v651 = vrot.slane %v304, %v650
        %v654 = vlaneseq
        %v655 = vshrl.u32 %v654, 7
        %v656 = vsub.s32 1, %v655
        %v657 = vrot.slane %v647, %v656
        %v658 = vlaneseq
        %v659 = vshrl.u32 %v658, 7
        %v660 = vsub.s32 1, %v659
        %v661 = vrot.slane %v651, %v660
        %v662 = vmul.f32 %v582, %v657
        %v663 = vmul.f32 %v582, %v661
        %v664 = vmul.f32 %v586, %v657
        %v665 = vmul.f32 %v586, %v661
        %v666 = vmul.f32 %v590, %v657
        %v667 = vmul.f32 %v590, %v661
        %v668 = vmul.f32 %v594, %v657
        %v669 = vmul.f32 %v594, %v661
        %v670 = vmul.f32 %v598, %v657
        %v671 = vmul.f32 %v598, %v661
        %v672 = vmul.f32 %v602, %v657
        %v673 = vmul.f32 %v602, %v661
        %v674 = vmul.f32 %v606, %v657
        %v675 = vmul.f32 %v606, %v661
        %v676 = vmul.f32 %v610, %v657
        %v677 = vmul.f32 %v610, %v661
        %v678 = vmul.f32 %v614, %v657
        %v679 = vmul.f32 %v614, %v661
        %v680 = vmul.f32 %v618, %v657
        %v681 = vmul.f32 %v618, %v661
        %v682 = vmul.f32 %v622, %v657
        %v683 = vmul.f32 %v622, %v661
        %v684 = vmul.f32 %v626, %v657
        %v685 = vmul.f32 %v626, %v661
        %v686 = vmul.f32 %v630, %v657
        %v687 = vmul.f32 %v630, %v661
        %v688 = vmul.f32 %v634, %v657
        %v689 = vmul.f32 %v634, %v661
        %v690 = vmul.f32 %v638, %v657
        %v691 = vmul.f32 %v638, %v661
        %v692 = vmul.f32 %v642, %v657
        %v693 = vmul.f32 %v642, %v661
        %v694 = vadd.f32 %v548, %v662
        %v695 = vadd.f32 %v549, %v663
        %v696 = vadd.f32 %v550, %v664
        %v697 = vadd.f32 %v551, %v665
        %v698 = vadd.f32 %v552, %v666
        %v699 = vadd.f32 %v553, %v667
        %v700 = vadd.f32 %v554, %v668
        %v701 = vadd.f32 %v555, %v669
        %v702 = vadd.f32 %v556, %v670
        %v703 = vadd.f32 %v557, %v671
        %v704 = vadd.f32 %v558, %v672
        %v705 = vadd.f32 %v559, %v673
        %v706 = vadd.f32 %v560, %v674
        %v707 = vadd.f32 %v561, %v675
        %v708 = vadd.f32 %v562, %v676
        %v709 = vadd.f32 %v563, %v677
        %v710 = vadd.f32 %v564, %v678
        %v711 = vadd.f32 %v565, %v679
        %v712 = vadd.f32 %v566, %v680
        %v713 = vadd.f32 %v567, %v681
        %v714 = vadd.f32 %v568, %v682
        %v715 = vadd.f32 %v569, %v683
        %v716 = vadd.f32 %v570, %v684
        %v717 = vadd.f32 %v571, %v685
        %v718 = vadd.f32 %v572, %v686
        %v719 = vadd.f32 %v573, %v687
        %v720 = vadd.f32 %v574, %v688
        %v721 = vadd.f32 %v575, %v689
        %v722 = vadd.f32 %v576, %v690
        %v723 = vadd.f32 %v577, %v691
        %v724 = vadd.f32 %v578, %v692
        %v725 = vadd.f32 %v579, %v693
        %v726 = vmax.f32 %v694, 0.0
        %v727 = vmax.f32 %v695, 0.0
        %v728 = vmax.f32 %v696, 0.0
        %v729 = vmax.f32 %v697, 0.0
        %v730 = vmax.f32 %v698, 0.0
        %v731 = vmax.f32 %v699, 0.0
        %v732 = vmax.f32 %v700, 0.0
        %v733 = vmax.f32 %v701, 0.0
        %v734 = vmax.f32 %v702, 0.0
        %v735 = vmax.f32 %v703, 0.0
        %v736 = vmax.f32 %v704, 0.0
        %v737 = vmax.f32 %v705, 0.0
        %v738 = vmax.f32 %v706, 0.0
        %v739 = vmax.f32 %v707, 0.0
        %v740 = vmax.f32 %v708, 0.0
        %v741 = vmax.f32 %v709, 0.0
        %v742 = vmax.f32 %v710, 0.0
        %v743 = vmax.f32 %v711, 0.0
        %v744 = vmax.f32 %v712, 0.0
        %v745 = vmax.f32 %v713, 0.0
        %v746 = vmax.f32 %v714, 0.0
        %v747 = vmax.f32 %v715, 0.0
        %v748 = vmax.f32 %v716, 0.0
        %v749 = vmax.f32 %v717, 0.0
        %v750 = vmax.f32 %v718, 0.0
        %v751 = vmax.f32 %v719, 0.0
        %v752 = vmax.f32 %v720, 0.0
        %v753 = vmax.f32 %v721, 0.0
        %v754 = vmax.f32 %v722, 0.0
        %v755 = vmax.f32 %v723, 0.0
        %v756 = vmax.f32 %v724, 0.0
        %v757 = vmax.f32 %v725, 0.0
        %v758 = vld [vmem:[%s3] sm:$0xff]
        %v759 = vld [vmem:[%s3 + $0x8] sm:$0xff]
        %v760 = vld [vmem:[%s3 + $0x10] sm:$0xff]
        %v761 = vld [vmem:[%s3 + $0x18] sm:$0xff]
        %v762 = vld [vmem:[%s3 + $0x20] sm:$0xff]
        %v763 = vld [vmem:[%s3 + $0x28] sm:$0xff]
        %v764 = vld [vmem:[%s3 + $0x30] sm:$0xff]
        %v765 = vld [vmem:[%s3 + $0x38] sm:$0xff]
        %v766 = vld [vmem:[%s3 + $0x40] sm:$0xff]
        %v767 = vld [vmem:[%s3 + $0x48] sm:$0xff]
        %v768 = vld [vmem:[%s3 + $0x50] sm:$0xff]
        %v769 = vld [vmem:[%s3 + $0x58] sm:$0xff]
        %v770 = vld [vmem:[%s3 + $0x60] sm:$0xff]
        %v771 = vld [vmem:[%s3 + $0x68] sm:$0xff]
        %v772 = vld [vmem:[%s3 + $0x70] sm:$0xff]
        %v773 = vld [vmem:[%s3 + $0x78] sm:$0xff]
        %v774 = vld [vmem:[%s4] sm:$0xff]
        %v775 = vld [vmem:[%s4 + $0x8] sm:$0xff]
        %v776 = vld [vmem:[%s4 + $0x10] sm:$0xff]
        %v777 = vld [vmem:[%s4 + $0x18] sm:$0xff]
        %v778 = vld [vmem:[%s4 + $0x20] sm:$0xff]
        %v779 = vld [vmem:[%s4 + $0x28] sm:$0xff]
        %v780 = vld [vmem:[%s4 + $0x30] sm:$0xff]
        %v781 = vld [vmem:[%s4 + $0x38] sm:$0xff]
        %v782 = vld [vmem:[%s4 + $0x40] sm:$0xff]
        %v783 = vld [vmem:[%s4 + $0x48] sm:$0xff]
        %v784 = vld [vmem:[%s4 + $0x50] sm:$0xff]
        %v785 = vld [vmem:[%s4 + $0x58] sm:$0xff]
        %v786 = vld [vmem:[%s4 + $0x60] sm:$0xff]
        %v787 = vld [vmem:[%s4 + $0x68] sm:$0xff]
        %v788 = vld [vmem:[%s4 + $0x70] sm:$0xff]
        %v789 = vld [vmem:[%s4 + $0x78] sm:$0xff]
        %791 = vset.pattern.permute.xlu0 0
        %792 = vperm.xlu0 %791, %v774
        %v793 = vpop.permute.xlu0 %792
        %796 = vset.pattern.permute.xlu0 0
        %797 = vperm.xlu0 %796, %v775
        %v798 = vpop.permute.xlu0 %797
        %801 = vset.pattern.permute.xlu0 0
        %802 = vperm.xlu0 %801, %v776
        %v803 = vpop.permute.xlu0 %802
        %806 = vset.pattern.permute.xlu0 0
        %807 = vperm.xlu0 %806, %v777
        %v808 = vpop.permute.xlu0 %807
        %811 = vset.pattern.permute.xlu0 0
        %812 = vperm.xlu0 %811, %v778
        %v813 = vpop.permute.xlu0 %812
        %816 = vset.pattern.permute.xlu0 0
        %817 = vperm.xlu0 %816, %v779
        %v818 = vpop.permute.xlu0 %817
        %821 = vset.pattern.permute.xlu0 0
        %822 = vperm.xlu0 %821, %v780
        %v823 = vpop.permute.xlu0 %822
        %826 = vset.pattern.permute.xlu0 0
        %827 = vperm.xlu0 %826, %v781
        %v828 = vpop.permute.xlu0 %827
        %831 = vset.pattern.permute.xlu0 0
        %832 = vperm.xlu0 %831, %v782
        %v833 = vpop.permute.xlu0 %832
        %836 = vset.pattern.permute.xlu0 0
        %837 = vperm.xlu0 %836, %v783
        %v838 = vpop.permute.xlu0 %837
        %841 = vset.pattern.permute.xlu0 0
        %842 = vperm.xlu0 %841, %v784
        %v843 = vpop.permute.xlu0 %842
        %846 = vset.pattern.permute.xlu0 0
        %847 = vperm.xlu0 %846, %v785
        %v848 = vpop.permute.xlu0 %847
        %851 = vset.pattern.permute.xlu0 0
        %852 = vperm.xlu0 %851, %v786
        %v853 = vpop.permute.xlu0 %852
        %856 = vset.pattern.permute.xlu0 0
        %857 = vperm.xlu0 %856, %v787
        %v858 = vpop.permute.xlu0 %857
        %861 = vset.pattern.permute.xlu0 0
        %862 = vperm.xlu0 %861, %v788
        %v863 = vpop.permute.xlu0 %862
        %866 = vset.pattern.permute.xlu0 0
        %867 = vperm.xlu0 %866, %v789
        %v868 = vpop.permute.xlu0 %867
        %870 = vmatprep.subr.mxu0 %v727
        %871 = vmatpush1.msra.mxu0 %v726
        %872 = vmatprep.subr.mxu0 %v729
        %873 = vmatpush1.msra.mxu0 %v728
        %874 = vmatprep.subr.mxu0 %v731
        %875 = vmatpush1.msra.mxu0 %v730
        %876 = vmatprep.subr.mxu0 %v733
        %877 = vmatpush1.msra.mxu0 %v732
        %878 = vmatprep.subr.mxu0 %v735
        %879 = vmatpush1.msra.mxu0 %v734
        %880 = vmatprep.subr.mxu0 %v737
        %881 = vmatpush1.msra.mxu0 %v736
        %882 = vmatprep.subr.mxu0 %v739
        %883 = vmatpush1.msra.mxu0 %v738
        %884 = vmatprep.subr.mxu0 %v741
        %885 = vmatpush1.msra.mxu0 %v740
        %886 = vmatprep.subr.mxu0 %v743
        %887 = vmatpush1.msra.mxu0 %v742
        %888 = vmatprep.subr.mxu0 %v745
        %889 = vmatpush1.msra.mxu0 %v744
        %890 = vmatprep.subr.mxu0 %v747
        %891 = vmatpush1.msra.mxu0 %v746
        %892 = vmatprep.subr.mxu0 %v749
        %893 = vmatpush1.msra.mxu0 %v748
        %894 = vmatprep.subr.mxu0 %v751
        %895 = vmatpush1.msra.mxu0 %v750
        %896 = vmatprep.subr.mxu0 %v753
        %897 = vmatpush1.msra.mxu0 %v752
        %898 = vmatprep.subr.mxu0 %v755
        %899 = vmatpush1.msra.mxu0 %v754
        %900 = vmatprep.subr.mxu0 %v757
        %901 = vmatpush1.msra.mxu0 %v756
        %902 = vmatprep.subr.mxu0 0.0
        %903 = vmatpush1.msra.mxu0 0.0
        %904 = vmatprep.subr.mxu0 0.0
        %905 = vmatpush1.msra.mxu0 0.0
        %906 = vmatprep.subr.mxu0 0.0
        %907 = vmatpush1.msra.mxu0 0.0
        %908 = vmatprep.subr.mxu0 0.0
        %909 = vmatpush1.msra.mxu0 0.0
        %910 = vmatprep.subr.mxu0 0.0
        %911 = vmatpush1.msra.mxu0 0.0
        %912 = vmatprep.subr.mxu0 0.0
        %913 = vmatpush1.msra.mxu0 0.0
        %914 = vmatprep.subr.mxu0 0.0
        %915 = vmatpush1.msra.mxu0 0.0
        %916 = vmatprep.subr.mxu0 0.0
        %917 = vmatpush1.msra.mxu0 0.0
        %918 = vmatprep.subr.mxu0 0.0
        %919 = vmatpush1.msra.mxu0 0.0
        %920 = vmatprep.subr.mxu0 0.0
        %921 = vmatpush1.msra.mxu0 0.0
        %922 = vmatprep.subr.mxu0 0.0
        %923 = vmatpush1.msra.mxu0 0.0
        %924 = vmatprep.subr.mxu0 0.0
        %925 = vmatpush1.msra.mxu0 0.0
        %926 = vmatprep.subr.mxu0 0.0
        %927 = vmatpush1.msra.mxu0 0.0
        %928 = vmatprep.subr.mxu0 0.0
        %929 = vmatpush1.msra.mxu0 0.0
        %930 = vmatprep.subr.mxu0 0.0
        %931 = vmatpush1.msra.mxu0 0.0
        %932 = vmatprep.subr.mxu0 0.0
        %933 = vmatpush1.msra.mxu0 0.0
        %934 = vmatprep.mubr.f32.mxu0 0.0
        %935 = vmatmul.mubr.f32.gmra.mrb[0].mxu0 %v758
        %v936 = vpop.f32.mrb[0].mxu0
        %v937 = vadd.f32 %v793, %v936
        %v938 = vpop.f32.mrb[0].mxu0
        %v939 = vadd.f32 %v793, %v938
        %940 = vmatprep.mubr.f32.mxu0 0.0
        %941 = vmatmul.mubr.f32.gmra.mrb[0].mxu0 %v759
        %v942 = vpop.f32.mrb[0].mxu0
        %v943 = vadd.f32 %v798, %v942
        %v944 = vpop.f32.mrb[0].mxu0
        %v945 = vadd.f32 %v798, %v944
        %946 = vmatprep.mubr.f32.mxu0 0.0
        %947 = vmatmul.mubr.f32.gmra.mrb[0].mxu0 %v760
        %v948 = vpop.f32.mrb[0].mxu0
        %v949 = vadd.f32 %v803, %v948
        %v950 = vpop.f32.mrb[0].mxu0
        %v951 = vadd.f32 %v803, %v950
        %952 = vmatprep.mubr.f32.mxu0 0.0
        %953 = vmatmul.mubr.f32.gmra.mrb[0].mxu0 %v761
        %v954 = vpop.f32.mrb[0].mxu0
        %v955 = vadd.f32 %v808, %v954
        %v956 = vpop.f32.mrb[0].mxu0
        %v957 = vadd.f32 %v808, %v956
        %958 = vmatprep.mubr.f32.mxu0 0.0
        %959 = vmatmul.mubr.f32.gmra.mrb[0].mxu0 %v762
        %v960 = vpop.f32.mrb[0].mxu0
        %v961 = vadd.f32 %v813, %v960
        %v962 = vpop.f32.mrb[0].mxu0
        %v963 = vadd.f32 %v813, %v962
        %964 = vmatprep.mubr.f32.mxu0 0.0
        %965 = vmatmul.mubr.f32.gmra.mrb[0].mxu0 %v763
        %v966 = vpop.f32.mrb[0].mxu0
        %v967 = vadd.f32 %v818, %v966
        %v968 = vpop.f32.mrb[0].mxu0
        %v969 = vadd.f32 %v818, %v968
        %970 = vmatprep.mubr.f32.mxu0 0.0
        %971 = vmatmul.mubr.f32.gmra.mrb[0].mxu0 %v764
        %v972 = vpop.f32.mrb[0].mxu0
        %v973 = vadd.f32 %v823, %v972
        %v974 = vpop.f32.mrb[0].mxu0
        %v975 = vadd.f32 %v823, %v974
        %976 = vmatprep.mubr.f32.mxu0 0.0
        %977 = vmatmul.mubr.f32.gmra.mrb[0].mxu0 %v765
        %v978 = vpop.f32.mrb[0].mxu0
        %v979 = vadd.f32 %v828, %v978
        %v980 = vpop.f32.mrb[0].mxu0
        %v981 = vadd.f32 %v828, %v980
        %982 = vmatprep.mubr.f32.mxu0 0.0
        %983 = vmatmul.mubr.f32.gmra.mrb[0].mxu0 %v766
        %v984 = vpop.f32.mrb[0].mxu0
        %v985 = vadd.f32 %v833, %v984
        %v986 = vpop.f32.mrb[0].mxu0
        %v987 = vadd.f32 %v833, %v986
        %988 = vmatprep.mubr.f32.mxu0 0.0
        %989 = vmatmul.mubr.f32.gmra.mrb[0].mxu0 %v767
        %v990 = vpop.f32.mrb[0].mxu0
        %v991 = vadd.f32 %v838, %v990
        %v992 = vpop.f32.mrb[0].mxu0
        %v993 = vadd.f32 %v838, %v992
        %994 = vmatprep.mubr.f32.mxu0 0.0
        %995 = vmatmul.mubr.f32.gmra.mrb[0].mxu0 %v768
        %v996 = vpop.f32.mrb[0].mxu0
        %v997 = vadd.f32 %v843, %v996
        %v998 = vpop.f32.mrb[0].mxu0
        %v999 = vadd.f32 %v843, %v998
        %1000 = vmatprep.mubr.f32.mxu0 0.0
        %1001 = vmatmul.mubr.f32.gmra.mrb[0].mxu0 %v769
        %v1002 = vpop.f32.mrb[0].mxu0
        %v1003 = vadd.f32 %v848, %v1002
        %v1004 = vpop.f32.mrb[0].mxu0
        %v1005 = vadd.f32 %v848, %v1004
        %1006 = vmatprep.mubr.f32.mxu0 0.0
        %1007 = vmatmul.mubr.f32.gmra.mrb[0].mxu0 %v770
        %v1008 = vpop.f32.mrb[0].mxu0
        %v1009 = vadd.f32 %v853, %v1008
        %v1010 = vpop.f32.mrb[0].mxu0
        %v1011 = vadd.f32 %v853, %v1010
        %1012 = vmatprep.mubr.f32.mxu0 0.0
        %1013 = vmatmul.mubr.f32.gmra.mrb[0].mxu0 %v771
        %v1014 = vpop.f32.mrb[0].mxu0
        %v1015 = vadd.f32 %v858, %v1014
        %v1016 = vpop.f32.mrb[0].mxu0
        %v1017 = vadd.f32 %v858, %v1016
        %1018 = vmatprep.mubr.f32.mxu0 0.0
        %1019 = vmatmul.mubr.f32.gmra.mrb[0].mxu0 %v772
        %v1020 = vpop.f32.mrb[0].mxu0
        %v1021 = vadd.f32 %v863, %v1020
        %v1022 = vpop.f32.mrb[0].mxu0
        %v1023 = vadd.f32 %v863, %v1022
        %1024 = vmatprep.mubr.f32.mxu0 0.0
        %1025 = vmatmul.mubr.f32.gmra.mrb[0].mxu0 %v773
        %v1026 = vpop.f32.mrb[0].mxu0
        %v1027 = vadd.f32 %v868, %v1026
        %v1028 = vpop.f32.mrb[0].mxu0
        %v1029 = vadd.f32 %v868, %v1028
        %1030 = vdwg.mxu0
        %v1031 = vmax.f32 %v937, 0.0
        %v1032 = vmax.f32 %v939, 0.0
        %v1033 = vmax.f32 %v943, 0.0
        %v1034 = vmax.f32 %v945, 0.0
        %v1035 = vmax.f32 %v949, 0.0
        %v1036 = vmax.f32 %v951, 0.0
        %v1037 = vmax.f32 %v955, 0.0
        %v1038 = vmax.f32 %v957, 0.0
        %v1039 = vmax.f32 %v961, 0.0
        %v1040 = vmax.f32 %v963, 0.0
        %v1041 = vmax.f32 %v967, 0.0
        %v1042 = vmax.f32 %v969, 0.0
        %v1043 = vmax.f32 %v973, 0.0
        %v1044 = vmax.f32 %v975, 0.0
        %v1045 = vmax.f32 %v979, 0.0
        %v1046 = vmax.f32 %v981, 0.0
        %v1047 = vmax.f32 %v985, 0.0
        %v1048 = vmax.f32 %v987, 0.0
        %v1049 = vmax.f32 %v991, 0.0
        %v1050 = vmax.f32 %v993, 0.0
        %v1051 = vmax.f32 %v997, 0.0
        %v1052 = vmax.f32 %v999, 0.0
        %v1053 = vmax.f32 %v1003, 0.0
        %v1054 = vmax.f32 %v1005, 0.0
        %v1055 = vmax.f32 %v1009, 0.0
        %v1056 = vmax.f32 %v1011, 0.0
        %v1057 = vmax.f32 %v1015, 0.0
        %v1058 = vmax.f32 %v1017, 0.0
        %v1059 = vmax.f32 %v1021, 0.0
        %v1060 = vmax.f32 %v1023, 0.0
        %v1061 = vmax.f32 %v1027, 0.0
        %v1062 = vmax.f32 %v1029, 0.0
        %v1063 = vld [vmem:[%s5] sm:$0xff]
        %v1064 = vld [vmem:[%s6] sm:$0xff]
        %1066 = vset.pattern.permute.xlu0 0
        %1067 = vperm.xlu0 %1066, %v1064
        %v1068 = vpop.permute.xlu0 %1067
        %1070 = vmatprep.subr.mxu0 %v1032
        %1071 = vmatpush1.msra.mxu0 %v1031
        %1072 = vmatprep.subr.mxu0 %v1034
        %1073 = vmatpush1.msra.mxu0 %v1033
        %1074 = vmatprep.subr.mxu0 %v1036
        %1075 = vmatpush1.msra.mxu0 %v1035
        %1076 = vmatprep.subr.mxu0 %v1038
        %1077 = vmatpush1.msra.mxu0 %v1037
        %1078 = vmatprep.subr.mxu0 %v1040
        %1079 = vmatpush1.msra.mxu0 %v1039
        %1080 = vmatprep.subr.mxu0 %v1042
        %1081 = vmatpush1.msra.mxu0 %v1041
        %1082 = vmatprep.subr.mxu0 %v1044
        %1083 = vmatpush1.msra.mxu0 %v1043
        %1084 = vmatprep.subr.mxu0 %v1046
        %1085 = vmatpush1.msra.mxu0 %v1045
        %1086 = vmatprep.subr.mxu0 %v1048
        %1087 = vmatpush1.msra.mxu0 %v1047
        %1088 = vmatprep.subr.mxu0 %v1050
        %1089 = vmatpush1.msra.mxu0 %v1049
        %1090 = vmatprep.subr.mxu0 %v1052
        %1091 = vmatpush1.msra.mxu0 %v1051
        %1092 = vmatprep.subr.mxu0 %v1054
        %1093 = vmatpush1.msra.mxu0 %v1053
        %1094 = vmatprep.subr.mxu0 %v1056
        %1095 = vmatpush1.msra.mxu0 %v1055
        %1096 = vmatprep.subr.mxu0 %v1058
        %1097 = vmatpush1.msra.mxu0 %v1057
        %1098 = vmatprep.subr.mxu0 %v1060
        %1099 = vmatpush1.msra.mxu0 %v1059
        %1100 = vmatprep.subr.mxu0 %v1062
        %1101 = vmatpush1.msra.mxu0 %v1061
        %1102 = vmatprep.subr.mxu0 0.0
        %1103 = vmatpush1.msra.mxu0 0.0
        %1104 = vmatprep.subr.mxu0 0.0
        %1105 = vmatpush1.msra.mxu0 0.0
        %1106 = vmatprep.subr.mxu0 0.0
        %1107 = vmatpush1.msra.mxu0 0.0
        %1108 = vmatprep.subr.mxu0 0.0
        %1109 = vmatpush1.msra.mxu0 0.0
        %1110 = vmatprep.subr.mxu0 0.0
        %1111 = vmatpush1.msra.mxu0 0.0
        %1112 = vmatprep.subr.mxu0 0.0
        %1113 = vmatpush1.msra.mxu0 0.0
        %1114 = vmatprep.subr.mxu0 0.0
        %1115 = vmatpush1.msra.mxu0 0.0
        %1116 = vmatprep.subr.mxu0 0.0
        %1117 = vmatpush1.msra.mxu0 0.0
        %1118 = vmatprep.subr.mxu0 0.0
        %1119 = vmatpush1.msra.mxu0 0.0
        %1120 = vmatprep.subr.mxu0 0.0
        %1121 = vmatpush1.msra.mxu0 0.0
        %1122 = vmatprep.subr.mxu0 0.0
        %1123 = vmatpush1.msra.mxu0 0.0
        %1124 = vmatprep.subr.mxu0 0.0
        %1125 = vmatpush1.msra.mxu0 0.0
        %1126 = vmatprep.subr.mxu0 0.0
        %1127 = vmatpush1.msra.mxu0 0.0
        %1128 = vmatprep.subr.mxu0 0.0
        %1129 = vmatpush1.msra.mxu0 0.0
        %1130 = vmatprep.subr.mxu0 0.0
        %1131 = vmatpush1.msra.mxu0 0.0
        %1132 = vmatprep.subr.mxu0 0.0
        %1133 = vmatpush1.msra.mxu0 0.0
        %1134 = vmatprep.mubr.f32.mxu0 0.0
        %1135 = vmatmul.mubr.f32.gmra.mrb[0].mxu0 %v1063
        %v1136 = vpop.f32.mrb[0].mxu0
        %v1137 = vadd.f32 %v1068, %v1136
        %v1138 = vpop.f32.mrb[0].mxu0
        %v1139 = vadd.f32 %v1068, %v1138
        %1140 = vdwg.mxu0
        %v1143 = vcombine.low %v1137, %v1139
        %1145 = vst [vmem:[%s284] sm:$0x77] %v1143
        %s1146 = sand.u32 %s181, 1
        %s1147 = scalar_lea.sflag [#allocation3], %s1146
        %s1148 = sand.u32 %s181, 1
        %s1149 = smul.addr %s1148, 8
        %s1150 = scalar_lea.vmem [#allocation2], %s1149
        // Predicated region
        $region49: #{spiralnet_forward.1} parent=47 // pred_check
          %p1151 = pneg %p191
        $region50: #{spiralnet_forward.1} parent=47 // pred_check_branch
          %1153 = sbr.rel (%p1151) target = $region52
        $region51: #{spiralnet_forward.1} parent=47 // pred_region
          %s1154 = smul.u32 2, %s21
          %s1155 = ssub.s32 3, %s1154
          %p1156 = scmp.lt.s32.totalorder %s1155, 2
          %s1157 = scalar_select %p1156, %s1155, 2
          %s1158 = smul.u32 64, %s1157
          %s1160 = ssub.s32 128, %s1158
          %1161 = vsyncadd %s1147, %s1160
          %p1162 = scmp.ne.s32.totalorder 0, %s1158
          %s1163 = smul.addr %s1154, 64
          %s1164 = scalar_lea.hbm %s7, %s1163
          %s1165 = smul.u32 %s1157, 4
          %s1166 = sshll.u32 %s1165, 4
          %s1167 = sshll.u32 %s1150, 4
          %s1168 = int_to_ptr.vmem [resolvable:$true] %s1167
          %1170 = dma.vmem_to_hbm [thread:$0]  (%p1162), %s1168, %s1166, %s1164, %s1147
        $region52: #{spiralnet_forward.1} parent=47 // pred_fallthru
          _
      $region48: #{spiralnet_forward.1} parent=5 // pred_fallthru
        _
      %p1171 = scmp.le.s32.totalorder 2, %s16
      // Predicated region
      $region53: #{spiralnet_forward.1} parent=5 // pred_check
        %p1172 = pneg %p1171
      $region54: #{spiralnet_forward.1} parent=5 // pred_check_branch
        %1174 = sbr.rel (%p1172) target = $region56
      $region55: #{spiralnet_forward.1} parent=5 // pred_region
        %s1175 = ssub.s32 %s16, 2
        // Predicated region
        $region57: #{spiralnet_forward.1} parent=55 // pred_check
          %p1176 = pneg %p197
        $region58: #{spiralnet_forward.1} parent=55 // pred_check_branch
          %1178 = sbr.rel (%p1176) target = $region60
        $region59: #{spiralnet_forward.1} parent=55 // pred_region
          %s1179 = sand.u32 %s182, 1
          %s1180 = scalar_lea.sflag [#allocation3], %s1179
          %s1181 = sand.u32 %s182, 1
          %s1182 = smul.addr %s1181, 8
          %s1183 = scalar_lea.vmem [#allocation2], %s1182
          %1184 = dma.done %s1180, 128
        $region60: #{spiralnet_forward.1} parent=55 // pred_fallthru
          _
      $region56: #{spiralnet_forward.1} parent=5 // pred_fallthru
        _
    $region6: #{spiralnet_forward.1} parent=1 // loop_footer
      %s20 = sadd.s32 1, %s16
    $region7: #{spiralnet_forward.1} parent=1 // loop_footer_branch
      %15 = sbr.rel target = $region3
    $region8: #{spiralnet_forward.1} parent=1 // loop_exit
      _
    %1185 = vsyncpa [#allocation3], 1
    %s1186 = scalar_lea.sflag [#allocation3], 1
    %1187 = vsyncpa %s1186, 1

</llo_original>
